<compile_context>
chip_gen: v6e
topology: v6e:2x2x1
jax: 0.10.0
libtpu: 0.0.40
codegen_flags: <defaults>
</compile_context>

<pallas_src>
import math

import jax
import jax.numpy as jnp
from jax.experimental import pallas as pl
from jax.experimental.pallas import tpu as pltpu

_IN_FEATURES = 10
_OUT_FEATURES = 2


def _mlp_kernel(x_ref, w1, b1, w2, b2, w3, b3, w4, b4, o_ref):
    """Fused 4-layer MLP on a lane-dense batch tile.

    x_ref : (10, TN)  X^T tile, batch on the 128-wide lane axis (bf16 or f32).
    w*    : (out, in) PyTorch-layout weights, f32, VMEM-resident.
    b*    : (out, 1)  biases, f32, VMEM-resident.
    o_ref : (2, TN)   logits^T tile, f32.

    Only the HBM stream of X may be bf16; it is upcast once here (VPU, free)
    and all matmuls / bias adds / ReLUs run in f32.
    """
    x = x_ref[...].astype(jnp.float32)                                   # (10, TN)
    h = jnp.maximum(
        jnp.dot(w1[...], x, preferred_element_type=jnp.float32) + b1[...], 0.0)
    h = jnp.maximum(
        jnp.dot(w2[...], h, preferred_element_type=jnp.float32) + b2[...], 0.0)
    h = jnp.maximum(
        jnp.dot(w3[...], h, preferred_element_type=jnp.float32) + b3[...], 0.0)
    out = jnp.dot(w4[...], h, preferred_element_type=jnp.float32) + b4[...]
    o_ref[...] = out.astype(o_ref.dtype)                                 # (2, TN)


def _round_up(v, m):
    return ((v + m - 1) // m) * m


def _pick_batch_tile(n, block_n, target_steps):
    """128-aligned batch tile.

    Guarantees >= target_steps grid steps when N is large (so v7x's two
    TensorCores both get work and DMA/compute pipelining exists), while never
    exceeding block_n (which bounds the VMEM footprint)."""
    if n <= 128:
        return n                                   # single tile == full array
    block_n = max(128, (block_n // 128) * 128)
    tn = min(block_n, _round_up(pl.cdiv(n, target_steps), 128))
    return max(128, tn)


def nn_classifier_forward(x, params, *, x_dtype=jnp.bfloat16, block_n=65536,
                          x_is_feature_major=False, batch_major_output=False,
                          target_steps=2):
    """Run the fused MLP kernel.

    Fast path: x is feature-major (10, N), ideally already `x_dtype` (the
    producer fuses the layout/cast).  Batch-major (N, 10) input is accepted but
    costs one extra XLA transpose pass over HBM.
    Returns feature-major (2, N) f32 logits by default (lane-dense layout kept
    end-to-end); set batch_major_output=True for the PyTorch-style (N, 2).
    """
    if x_is_feature_major:
        f, n = x.shape
        xt = x
    else:
        n, f = x.shape
        # NOTE: full extra HBM read+write pass; prefer producing X feature-major
        # upstream so the kernel's own input DMA is the only pass over X.
        xt = x.T
    assert f == _IN_FEATURES, f
    xt = xt.astype(x_dtype)          # no-op if the producer already emitted x_dtype

    tn = _pick_batch_tile(n, block_n, target_steps)
    grid = (pl.cdiv(n, tn),)

    # Tiny resident weights/biases stay f32 (full-precision logits).
    w1 = params["w1"].astype(jnp.float32)
    w2 = params["w2"].astype(jnp.float32)
    w3 = params["w3"].astype(jnp.float32)
    w4 = params["w4"].astype(jnp.float32)
    b1 = params["b1"].reshape(-1, 1).astype(jnp.float32)
    b2 = params["b2"].reshape(-1, 1).astype(jnp.float32)
    b3 = params["b3"].reshape(-1, 1).astype(jnp.float32)
    b4 = params["b4"].reshape(-1, 1).astype(jnp.float32)

    # Explicit VMEM budget (works for v5e's 16 MiB / v6e's 32 MiB scoped default
    # and v7x's 64 MiB physical): double-buffered lane-dense input/output tiles
    # plus the in-kernel f32 activation temporaries (10 rows pad to 16 sublanes).
    itemsize = jnp.finfo(x_dtype).bits // 8
    in_bytes = 2 * 16 * tn * itemsize           # X^T tile, double buffered
    out_bytes = 2 * 8 * tn * 4                  # (2 -> 8 sublane padded, tn) f32, x2
    tmp_bytes = 4 * 16 * tn * 4                 # f32 activations / matmul results
    vmem_limit = int(min(in_bytes + out_bytes + tmp_bytes + (4 << 20), 64 << 20))

    cost = pl.CostEstimate(
        flops=2 * n * (3 * 10 * 10 + 10 * 2),
        transcendentals=0,
        bytes_accessed=n * (10 * itemsize + 2 * 4) + 4 * (10 * 10 + 10) * 4,
    )

    resident = lambda i: (0, 0)
    out_t = pl.pallas_call(
        _mlp_kernel,
        out_shape=jax.ShapeDtypeStruct((_OUT_FEATURES, n), jnp.float32),
        grid=grid,
        in_specs=[
            pl.BlockSpec((_IN_FEATURES, tn), lambda i: (0, i)),   # pipelined X^T tile
            pl.BlockSpec((10, 10), resident), pl.BlockSpec((10, 1), resident),
            pl.BlockSpec((10, 10), resident), pl.BlockSpec((10, 1), resident),
            pl.BlockSpec((10, 10), resident), pl.BlockSpec((10, 1), resident),
            pl.BlockSpec((2, 10), resident),  pl.BlockSpec((2, 1), resident),
        ],
        out_specs=pl.BlockSpec((_OUT_FEATURES, tn), lambda i: (0, i)),
        compiler_params=pltpu.CompilerParams(
            dimension_semantics=("parallel",),      # megacore over batch on v7x
            vmem_limit_bytes=vmem_limit),
        cost_estimate=cost,
    )(xt, w1, b1, w2, b2, w3, b3, w4, b4)

    if batch_major_output:
        # Extra XLA pass; keep the lane-dense (2, N) layout when the consumer can.
        return out_t.T
    return out_t


def init_params(key):
    """Deterministic init mimicking nn.Linear default: U(+/- 1/sqrt(fan_in)).

    Weights are kept in PyTorch layout (out_features, in_features)."""
    dims = [(10, 10), (10, 10), (10, 10), (2, 10)]   # (out, in)
    params = {}
    for i, (fan_out, fan_in) in enumerate(dims, start=1):
        key, kw, kb = jax.random.split(key, 3)
        bound = 1.0 / math.sqrt(fan_in)
        params[f"w{i}"] = jax.random.uniform(
            kw, (fan_out, fan_in), jnp.float32, minval=-bound, maxval=bound)
        params[f"b{i}"] = jax.random.uniform(
            kb, (fan_out,), jnp.float32, minval=-bound, maxval=bound)
    return params


def _reference_forward(x, params):
    h = jnp.maximum(x @ params["w1"].T + params["b1"], 0.0)
    h = jnp.maximum(h @ params["w2"].T + params["b2"], 0.0)
    h = jnp.maximum(h @ params["w3"].T + params["b3"], 0.0)
    return h @ params["w4"].T + params["b4"]


if __name__ == "__main__":
    key = jax.random.PRNGKey(0)
    kp, kx, kx2 = jax.random.split(key, 3)
    params = init_params(kp)

    # --- small single-tile smoke test: batch=8, feature-major bf16 producer ---
    n = 8
    x = jax.random.normal(kx, (n, _IN_FEATURES), dtype=jnp.float32)
    xt_bf16 = x.T.astype(jnp.bfloat16)          # "producer" emits feature-major bf16
    out_t = jax.block_until_ready(
        nn_classifier_forward(xt_bf16, params, x_is_feature_major=True))
    assert out_t.shape == (_OUT_FEATURES, n), out_t.shape
    # Kernel compute is all-f32, so it matches the f32 reference on the
    # bf16-rounded input to tight tolerance.
    ref = _reference_forward(xt_bf16.astype(jnp.float32).T, params)
    assert jnp.allclose(out_t.T, ref, atol=1e-4, rtol=1e-4), "bf16-input mismatch"

    # --- multi-tile ragged-batch check (grid pipelining), f32 input ---
    n2 = 300
    x2 = jax.random.normal(kx2, (n2, _IN_FEATURES), dtype=jnp.float32)
    ref2 = _reference_forward(x2, params)
    out2 = jax.block_until_ready(
        nn_classifier_forward(x2.T, params, x_is_feature_major=True,
                              x_dtype=jnp.float32, block_n=128))
    assert out2.shape == (_OUT_FEATURES, n2), out2.shape
    assert jnp.allclose(out2.T, ref2, atol=1e-4, rtol=1e-4), "f32 tiled mismatch"

    # --- PyTorch-layout convenience path: (N, 10) in, (N, 2) out ---
    out3 = jax.block_until_ready(
        nn_classifier_forward(x2, params, x_dtype=jnp.float32, block_n=128,
                              batch_major_output=True))
    assert out3.shape == (n2, _OUT_FEATURES), out3.shape
    assert jnp.allclose(out3, ref2, atol=1e-4, rtol=1e-4), "batch-major path mismatch"

    # TODO(synk): fit()/predict()/BinaryCounter/save_model (Adam training loop,
    # accuracy counters, checkpointing) are host-side utilities, not part of the
    # forward-pass kernel.
    print("KERNEL_OK")
</pallas_src>

<mosaic_0001>
module attributes {stable_mosaic.version = 11 : i64} {
  func.func @_mlp_kernel(%arg0: i32, %arg1: memref<10x8xbf16, #tpu.memory_space<vmem>>, %arg2: memref<10x10xf32, #tpu.memory_space<vmem>>, %arg3: memref<10x1xf32, #tpu.memory_space<vmem>>, %arg4: memref<10x10xf32, #tpu.memory_space<vmem>>, %arg5: memref<10x1xf32, #tpu.memory_space<vmem>>, %arg6: memref<10x10xf32, #tpu.memory_space<vmem>>, %arg7: memref<10x1xf32, #tpu.memory_space<vmem>>, %arg8: memref<2x10xf32, #tpu.memory_space<vmem>>, %arg9: memref<2x1xf32, #tpu.memory_space<vmem>>, %arg10: memref<2x8xf32, #tpu.memory_space<vmem>>) attributes {dimension_semantics = [#tpu.dimension_semantics<parallel>], iteration_bounds = array<i64: 1>, scalar_prefetch = 0 : i64, scratch_operands = 0 : i64, tpu.core_type = #tpu.core_type<tc>, window_params = [{transform_indices = @transform_0, window_bounds = array<i64: 10, 8>}, {pipeline_mode = #tpu.pipeline_mode<synchronous>, transform_indices = @transform_1, window_bounds = array<i64: 10, 10>}, {pipeline_mode = #tpu.pipeline_mode<synchronous>, transform_indices = @transform_2, window_bounds = array<i64: 10, 1>}, {pipeline_mode = #tpu.pipeline_mode<synchronous>, transform_indices = @transform_3, window_bounds = array<i64: 10, 10>}, {pipeline_mode = #tpu.pipeline_mode<synchronous>, transform_indices = @transform_4, window_bounds = array<i64: 10, 1>}, {pipeline_mode = #tpu.pipeline_mode<synchronous>, transform_indices = @transform_5, window_bounds = array<i64: 10, 10>}, {pipeline_mode = #tpu.pipeline_mode<synchronous>, transform_indices = @transform_6, window_bounds = array<i64: 10, 1>}, {pipeline_mode = #tpu.pipeline_mode<synchronous>, transform_indices = @transform_7, window_bounds = array<i64: 2, 10>}, {pipeline_mode = #tpu.pipeline_mode<synchronous>, transform_indices = @transform_8, window_bounds = array<i64: 2, 1>}, {transform_indices = @transform_9, window_bounds = array<i64: 2, 8>}]} {
    %c0 = arith.constant 0 : index
    %c0_0 = arith.constant 0 : index
    %0 = vector.load %arg1[%c0, %c0_0] : memref<10x8xbf16, #tpu.memory_space<vmem>>, vector<10x8xbf16>
    %1 = arith.extf %0 : vector<10x8xbf16> to vector<10x8xf32>
    %c0_1 = arith.constant 0 : index
    %c0_2 = arith.constant 0 : index
    %2 = vector.load %arg2[%c0_1, %c0_2] : memref<10x10xf32, #tpu.memory_space<vmem>>, vector<10x10xf32>
    %cst = arith.constant dense<0.000000e+00> : vector<10x8xf32>
    %3 = tpu.matmul %2, %1, %cst {dimension_numbers = #tpu.dot_dimension_numbers<[1], [0], [0], [1], [0, 0, 1, 1], [], []>} : vector<10x10xf32>, vector<10x8xf32>, vector<10x8xf32> -> vector<10x8xf32>
    %c0_3 = arith.constant 0 : index
    %c0_4 = arith.constant 0 : index
    %4 = vector.load %arg3[%c0_3, %c0_4] : memref<10x1xf32, #tpu.memory_space<vmem>>, vector<10x1xf32>
    %5 = vector.broadcast %4 : vector<10x1xf32> to vector<10x8xf32>
    %6 = arith.addf %3, %5 : vector<10x8xf32>
    %cst_5 = arith.constant 0.000000e+00 : f32
    %7 = vector.broadcast %cst_5 : f32 to vector<10x8xf32>
    %8 = arith.maximumf %6, %7 : vector<10x8xf32>
    %c0_6 = arith.constant 0 : index
    %c0_7 = arith.constant 0 : index
    %9 = vector.load %arg4[%c0_6, %c0_7] : memref<10x10xf32, #tpu.memory_space<vmem>>, vector<10x10xf32>
    %cst_8 = arith.constant dense<0.000000e+00> : vector<10x8xf32>
    %10 = tpu.matmul %9, %8, %cst_8 {dimension_numbers = #tpu.dot_dimension_numbers<[1], [0], [0], [1], [0, 0, 1, 1], [], []>} : vector<10x10xf32>, vector<10x8xf32>, vector<10x8xf32> -> vector<10x8xf32>
    %c0_9 = arith.constant 0 : index
    %c0_10 = arith.constant 0 : index
    %11 = vector.load %arg5[%c0_9, %c0_10] : memref<10x1xf32, #tpu.memory_space<vmem>>, vector<10x1xf32>
    %12 = vector.broadcast %11 : vector<10x1xf32> to vector<10x8xf32>
    %13 = arith.addf %10, %12 : vector<10x8xf32>
    %cst_11 = arith.constant 0.000000e+00 : f32
    %14 = vector.broadcast %cst_11 : f32 to vector<10x8xf32>
    %15 = arith.maximumf %13, %14 : vector<10x8xf32>
    %c0_12 = arith.constant 0 : index
    %c0_13 = arith.constant 0 : index
    %16 = vector.load %arg6[%c0_12, %c0_13] : memref<10x10xf32, #tpu.memory_space<vmem>>, vector<10x10xf32>
    %cst_14 = arith.constant dense<0.000000e+00> : vector<10x8xf32>
    %17 = tpu.matmul %16, %15, %cst_14 {dimension_numbers = #tpu.dot_dimension_numbers<[1], [0], [0], [1], [0, 0, 1, 1], [], []>} : vector<10x10xf32>, vector<10x8xf32>, vector<10x8xf32> -> vector<10x8xf32>
    %c0_15 = arith.constant 0 : index
    %c0_16 = arith.constant 0 : index
    %18 = vector.load %arg7[%c0_15, %c0_16] : memref<10x1xf32, #tpu.memory_space<vmem>>, vector<10x1xf32>
    %19 = vector.broadcast %18 : vector<10x1xf32> to vector<10x8xf32>
    %20 = arith.addf %17, %19 : vector<10x8xf32>
    %cst_17 = arith.constant 0.000000e+00 : f32
    %21 = vector.broadcast %cst_17 : f32 to vector<10x8xf32>
    %22 = arith.maximumf %20, %21 : vector<10x8xf32>
    %c0_18 = arith.constant 0 : index
    %c0_19 = arith.constant 0 : index
    %23 = vector.load %arg8[%c0_18, %c0_19] : memref<2x10xf32, #tpu.memory_space<vmem>>, vector<2x10xf32>
    %cst_20 = arith.constant dense<0.000000e+00> : vector<2x8xf32>
    %24 = tpu.matmul %23, %22, %cst_20 {dimension_numbers = #tpu.dot_dimension_numbers<[1], [0], [0], [1], [0, 0, 1, 1], [], []>} : vector<2x10xf32>, vector<10x8xf32>, vector<2x8xf32> -> vector<2x8xf32>
    %c0_21 = arith.constant 0 : index
    %c0_22 = arith.constant 0 : index
    %25 = vector.load %arg9[%c0_21, %c0_22] : memref<2x1xf32, #tpu.memory_space<vmem>>, vector<2x1xf32>
    %26 = vector.broadcast %25 : vector<2x1xf32> to vector<2x8xf32>
    %27 = arith.addf %24, %26 : vector<2x8xf32>
    %c0_23 = arith.constant 0 : index
    %c0_24 = arith.constant 0 : index
    %28 = vector.load %arg10[%c0_23, %c0_24] : memref<2x8xf32, #tpu.memory_space<vmem>>, vector<2x8xf32>
    tpu.vector_store %arg10[%c0_23, %c0_24], %27 {strides = array<i32>} : memref<2x8xf32, #tpu.memory_space<vmem>>, vector<2x8xf32>,
    return
  }
  func.func @transform_0(%arg0: i32) -> (i32, i32) {
    %c0_i32 = arith.constant 0 : i32
    %c0_i32_0 = arith.constant 0 : i32
    return %c0_i32, %arg0 : i32, i32
  }
  func.func @transform_1(%arg0: i32) -> (i32, i32) {
    %c0_i32 = arith.constant 0 : i32
    %c0_i32_0 = arith.constant 0 : i32
    %c0_i32_1 = arith.constant 0 : i32
    return %c0_i32, %c0_i32_0 : i32, i32
  }
  func.func @transform_2(%arg0: i32) -> (i32, i32) {
    %c0_i32 = arith.constant 0 : i32
    %c0_i32_0 = arith.constant 0 : i32
    %c0_i32_1 = arith.constant 0 : i32
    return %c0_i32, %c0_i32_0 : i32, i32
  }
  func.func @transform_3(%arg0: i32) -> (i32, i32) {
    %c0_i32 = arith.constant 0 : i32
    %c0_i32_0 = arith.constant 0 : i32
    %c0_i32_1 = arith.constant 0 : i32
    return %c0_i32, %c0_i32_0 : i32, i32
  }
  func.func @transform_4(%arg0: i32) -> (i32, i32) {
    %c0_i32 = arith.constant 0 : i32
    %c0_i32_0 = arith.constant 0 : i32
    %c0_i32_1 = arith.constant 0 : i32
    return %c0_i32, %c0_i32_0 : i32, i32
  }
  func.func @transform_5(%arg0: i32) -> (i32, i32) {
    %c0_i32 = arith.constant 0 : i32
    %c0_i32_0 = arith.constant 0 : i32
    %c0_i32_1 = arith.constant 0 : i32
    return %c0_i32, %c0_i32_0 : i32, i32
  }
  func.func @transform_6(%arg0: i32) -> (i32, i32) {
    %c0_i32 = arith.constant 0 : i32
    %c0_i32_0 = arith.constant 0 : i32
    %c0_i32_1 = arith.constant 0 : i32
    return %c0_i32, %c0_i32_0 : i32, i32
  }
  func.func @transform_7(%arg0: i32) -> (i32, i32) {
    %c0_i32 = arith.constant 0 : i32
    %c0_i32_0 = arith.constant 0 : i32
    %c0_i32_1 = arith.constant 0 : i32
    return %c0_i32, %c0_i32_0 : i32, i32
  }
  func.func @transform_8(%arg0: i32) -> (i32, i32) {
    %c0_i32 = arith.constant 0 : i32
    %c0_i32_0 = arith.constant 0 : i32
    %c0_i32_1 = arith.constant 0 : i32
    return %c0_i32, %c0_i32_0 : i32, i32
  }
  func.func @transform_9(%arg0: i32) -> (i32, i32) {
    %c0_i32 = arith.constant 0 : i32
    %c0_i32_0 = arith.constant 0 : i32
    return %c0_i32, %arg0 : i32, i32
  }
}

</mosaic_0001>

<llo_original>
// kernel: tpu_custom_call.1
$region0: #{tpu_custom_call.1}
  #allocation0 [shape = 'u32[]', space=smem, size = 0x4, offset = 0x4, fixed_abs, tag = 'smem constant byte address 0x4 - core index']
  #allocation1 [shape = 'u32[144,128]{1,0:T(1,128)}', space=vmem, size = 0x12000, scoped, tag = 'internal scratch']
  %s0 = inlined_call_operand.vmem [shape: bf16[10,8], index: 0, kind: input, shape index: {}]
  %s1 = inlined_call_operand.vmem [shape: f32[10,10], index: 1, kind: input, shape index: {}]
  %s2 = inlined_call_operand.vmem [shape: f32[10,1], index: 2, kind: input, shape index: {}]
  %s3 = inlined_call_operand.vmem [shape: f32[10,10], index: 3, kind: input, shape index: {}]
  %s4 = inlined_call_operand.vmem [shape: f32[10,1], index: 4, kind: input, shape index: {}]
  %s5 = inlined_call_operand.vmem [shape: f32[10,10], index: 5, kind: input, shape index: {}]
  %s6 = inlined_call_operand.vmem [shape: f32[10,1], index: 6, kind: input, shape index: {}]
  %s7 = inlined_call_operand.vmem [shape: f32[2,10], index: 7, kind: input, shape index: {}]
  %s8 = inlined_call_operand.vmem [shape: f32[2,1], index: 8, kind: input, shape index: {}]
  %s9 = inlined_call_operand.hbm [shape: f32[2,8], index: 9, kind: output, shape index: {}]
  %s10 = sld [smem:[#allocation0]]
  $region46: #{tpu_custom_call.1} parent=0
    _
  %s12 = ssub.s32 1, %s10
  %s13 = scalar_select 0, %s12, %s10
  $region1: #{tpu_custom_call.1} parent=0
    #allocation2 [shape = 'u8[1024]{0}', space=vmem, size = 0x400, scoped, tag = 'output window, operand 0, single buffered']
    #allocation3 [shape = 's32[1]{0}', space=sflag, size = 0x4, scoped, tag = 'scoped memory for tpu_custom_call.1']
    %14 = vsyncpa [#allocation3], 0
    // Predicated region
    $region2: #{tpu_custom_call.1} parent=1 // pred_check
      _
    $region3: #{tpu_custom_call.1} parent=1 // pred_check_branch
      %16 = sbr.rel (0) target = $region5
    $region4: #{tpu_custom_call.1} parent=1 // pred_region
      _
    $region5: #{tpu_custom_call.1} parent=1 // pred_fallthru
      _
    // Predicated region
    $region6: #{tpu_custom_call.1} parent=1 // pred_check
      _
    $region7: #{tpu_custom_call.1} parent=1 // pred_check_branch
      %18 = sbr.rel (0) target = $region9
    $region8: #{tpu_custom_call.1} parent=1 // pred_region
      _
    $region9: #{tpu_custom_call.1} parent=1 // pred_fallthru
      _
    // Predicated region
    $region10: #{tpu_custom_call.1} parent=1 // pred_check
      _
    $region11: #{tpu_custom_call.1} parent=1 // pred_check_branch
      %20 = sbr.rel (0) target = $region13
    $region12: #{tpu_custom_call.1} parent=1 // pred_region
      _
    $region13: #{tpu_custom_call.1} parent=1 // pred_fallthru
      _
    // Predicated region
    $region14: #{tpu_custom_call.1} parent=1 // pred_check
      _
    $region15: #{tpu_custom_call.1} parent=1 // pred_check_branch
      %22 = sbr.rel (0) target = $region17
    $region16: #{tpu_custom_call.1} parent=1 // pred_region
      _
    $region17: #{tpu_custom_call.1} parent=1 // pred_fallthru
      _
    // Predicated region
    $region18: #{tpu_custom_call.1} parent=1 // pred_check
      _
    $region19: #{tpu_custom_call.1} parent=1 // pred_check_branch
      %24 = sbr.rel (0) target = $region21
    $region20: #{tpu_custom_call.1} parent=1 // pred_region
      _
    $region21: #{tpu_custom_call.1} parent=1 // pred_fallthru
      _
    // Predicated region
    $region22: #{tpu_custom_call.1} parent=1 // pred_check
      _
    $region23: #{tpu_custom_call.1} parent=1 // pred_check_branch
      %26 = sbr.rel (0) target = $region25
    $region24: #{tpu_custom_call.1} parent=1 // pred_region
      _
    $region25: #{tpu_custom_call.1} parent=1 // pred_fallthru
      _
    // Predicated region
    $region26: #{tpu_custom_call.1} parent=1 // pred_check
      _
    $region27: #{tpu_custom_call.1} parent=1 // pred_check_branch
      %28 = sbr.rel (0) target = $region29
    $region28: #{tpu_custom_call.1} parent=1 // pred_region
      _
    $region29: #{tpu_custom_call.1} parent=1 // pred_fallthru
      _
    // Predicated region
    $region30: #{tpu_custom_call.1} parent=1 // pred_check
      _
    $region31: #{tpu_custom_call.1} parent=1 // pred_check_branch
      %30 = sbr.rel (0) target = $region33
    $region32: #{tpu_custom_call.1} parent=1 // pred_region
      _
    $region33: #{tpu_custom_call.1} parent=1 // pred_fallthru
      _
    // Predicated region
    $region34: #{tpu_custom_call.1} parent=1 // pred_check
      _
    $region35: #{tpu_custom_call.1} parent=1 // pred_check_branch
      %32 = sbr.rel (0) target = $region37
    $region36: #{tpu_custom_call.1} parent=1 // pred_region
      _
    $region37: #{tpu_custom_call.1} parent=1 // pred_fallthru
      _
    %v33 = vld [vmem:[%s0] sm:$0xf]
    %v34 = vld [vmem:[%s0 + $0x4] sm:$0x1]
    %v35 = vunpack.c.l.bf16 %v33
    %v36 = vunpack.c.l.bf16 %v34
    %v37 = vld [vmem:[%s1] sm:$0xff]
    %v38 = vld [vmem:[%s1 + $0x8] sm:$0x3]
    %v39 = vld [vmem:[%s2] sm:$0xff]
    %v40 = vld [vmem:[%s2 + $0x8] sm:$0x3]
    %42 = vset.pattern.permute.xlu0 0
    %43 = vperm.xlu0 %42, %v39
    %v44 = vpop.permute.xlu0 %43
    %47 = vset.pattern.permute.xlu0 0
    %48 = vperm.xlu0 %47, %v40
    %v49 = vpop.permute.xlu0 %48
    %vm51 = vcmask 80896
    %v53 = vsel %vm51, %v37, 0
    %v56 = vsel %vm51, %v38, 0
    %vm58 = vcmask 1041408
    %v60 = vsel %vm58, %v36, 0
    %62 = vmatprep.subr.mxu0 0.0
    %63 = vmatpush1.msra.mxu0 0.0
    %64 = vmatprep.subr.mxu0 0.0
    %65 = vmatpush1.msra.mxu0 0.0
    %66 = vmatprep.subr.mxu0 0.0
    %67 = vmatpush1.msra.mxu0 0.0
    %68 = vmatprep.subr.mxu0 0.0
    %69 = vmatpush1.msra.mxu0 0.0
    %70 = vmatprep.subr.mxu0 0.0
    %71 = vmatpush1.msra.mxu0 0.0
    %72 = vmatprep.subr.mxu0 0.0
    %73 = vmatpush1.msra.mxu0 0.0
    %74 = vmatprep.subr.mxu0 0.0
    %75 = vmatpush1.msra.mxu0 0.0
    %76 = vmatprep.subr.mxu0 0.0
    %77 = vmatpush1.msra.mxu0 0.0
    %78 = vmatprep.subr.mxu0 0.0
    %79 = vmatpush1.msra.mxu0 0.0
    %80 = vmatprep.subr.mxu0 0.0
    %81 = vmatpush1.msra.mxu0 0.0
    %82 = vmatprep.subr.mxu0 0.0
    %83 = vmatpush1.msra.mxu0 0.0
    %84 = vmatprep.subr.mxu0 0.0
    %85 = vmatpush1.msra.mxu0 0.0
    %86 = vmatprep.subr.mxu0 0.0
    %87 = vmatpush1.msra.mxu0 0.0
    %88 = vmatprep.subr.mxu0 0.0
    %89 = vmatpush1.msra.mxu0 0.0
    %90 = vmatprep.subr.mxu0 0.0
    %91 = vmatpush1.msra.mxu0 %v60
    %92 = vmatprep.subr.mxu0 0.0
    %93 = vmatpush1.msra.mxu0 %v35
    %94 = vmatprep.subr.mxu0 0.0
    %95 = vmatpush2.msra.mxu0 0.0
    %96 = vmatprep.subr.mxu0 0.0
    %97 = vmatpush2.msra.mxu0 0.0
    %98 = vmatprep.subr.mxu0 0.0
    %99 = vmatpush2.msra.mxu0 0.0
    %100 = vmatprep.subr.mxu0 0.0
    %101 = vmatpush2.msra.mxu0 0.0
    %102 = vmatprep.subr.mxu0 0.0
    %103 = vmatpush2.msra.mxu0 0.0
    %104 = vmatprep.subr.mxu0 0.0
    %105 = vmatpush2.msra.mxu0 0.0
    %106 = vmatprep.subr.mxu0 0.0
    %107 = vmatpush2.msra.mxu0 0.0
    %108 = vmatprep.subr.mxu0 0.0
    %109 = vmatpush2.msra.mxu0 0.0
    %110 = vmatprep.subr.mxu0 0.0
    %111 = vmatpush2.msra.mxu0 0.0
    %112 = vmatprep.subr.mxu0 0.0
    %113 = vmatpush2.msra.mxu0 0.0
    %114 = vmatprep.subr.mxu0 0.0
    %115 = vmatpush2.msra.mxu0 0.0
    %116 = vmatprep.subr.mxu0 0.0
    %117 = vmatpush2.msra.mxu0 0.0
    %118 = vmatprep.subr.mxu0 0.0
    %119 = vmatpush2.msra.mxu0 0.0
    %120 = vmatprep.subr.mxu0 0.0
    %121 = vmatpush2.msra.mxu0 0.0
    %122 = vmatprep.subr.mxu0 0.0
    %123 = vmatpush2.msra.mxu0 0.0
    %124 = vmatprep.subr.mxu0 0.0
    %125 = vmatpush2.msra.mxu0 0.0
    %126 = vmatprep.mubr.f32.mxu0 0.0
    %127 = vmatmul.mubr.f32.gmra.mxu0 %v53
    %v128 = vpop.f32.mrf.mxu0
    %v129 = vadd.f32 %v44, %v128
    %v130 = vpop.f32.mrf.mxu0
    %131 = vmatprep.mubr.f32.mxu0 0.0
    %132 = vmatmul.mubr.f32.gmra.mxu0 %v56
    %v133 = vpop.f32.mrf.mxu0
    %v134 = vadd.f32 %v49, %v133
    %v135 = vpop.f32.mrf.mxu0
    %136 = vdwg.mxu0
    %v137 = vmax.f32 %v129, 0.0
    %v138 = vmax.f32 %v134, 0.0
    %v139 = vld [vmem:[%s3] sm:$0xff]
    %v140 = vld [vmem:[%s3 + $0x8] sm:$0x3]
    %v141 = vld [vmem:[%s4] sm:$0xff]
    %v142 = vld [vmem:[%s4 + $0x8] sm:$0x3]
    %144 = vset.pattern.permute.xlu0 0
    %145 = vperm.xlu0 %144, %v141
    %v146 = vpop.permute.xlu0 %145
    %149 = vset.pattern.permute.xlu0 0
    %150 = vperm.xlu0 %149, %v142
    %v151 = vpop.permute.xlu0 %150
    %v154 = vsel %vm51, %v139, 0
    %v157 = vsel %vm51, %v140, 0
    %v160 = vsel %vm58, %v138, 0
    %162 = vmatprep.subr.mxu0 0.0
    %163 = vmatpush1.msra.mxu0 0.0
    %164 = vmatprep.subr.mxu0 0.0
    %165 = vmatpush1.msra.mxu0 0.0
    %166 = vmatprep.subr.mxu0 0.0
    %167 = vmatpush1.msra.mxu0 0.0
    %168 = vmatprep.subr.mxu0 0.0
    %169 = vmatpush1.msra.mxu0 0.0
    %170 = vmatprep.subr.mxu0 0.0
    %171 = vmatpush1.msra.mxu0 0.0
    %172 = vmatprep.subr.mxu0 0.0
    %173 = vmatpush1.msra.mxu0 0.0
    %174 = vmatprep.subr.mxu0 0.0
    %175 = vmatpush1.msra.mxu0 0.0
    %176 = vmatprep.subr.mxu0 0.0
    %177 = vmatpush1.msra.mxu0 0.0
    %178 = vmatprep.subr.mxu0 0.0
    %179 = vmatpush1.msra.mxu0 0.0
    %180 = vmatprep.subr.mxu0 0.0
    %181 = vmatpush1.msra.mxu0 0.0
    %182 = vmatprep.subr.mxu0 0.0
    %183 = vmatpush1.msra.mxu0 0.0
    %184 = vmatprep.subr.mxu0 0.0
    %185 = vmatpush1.msra.mxu0 0.0
    %186 = vmatprep.subr.mxu0 0.0
    %187 = vmatpush1.msra.mxu0 0.0
    %188 = vmatprep.subr.mxu0 0.0
    %189 = vmatpush1.msra.mxu0 0.0
    %190 = vmatprep.subr.mxu0 0.0
    %191 = vmatpush1.msra.mxu0 %v160
    %192 = vmatprep.subr.mxu0 0.0
    %193 = vmatpush1.msra.mxu0 %v137
    %194 = vmatprep.subr.mxu0 0.0
    %195 = vmatpush2.msra.mxu0 0.0
    %196 = vmatprep.subr.mxu0 0.0
    %197 = vmatpush2.msra.mxu0 0.0
    %198 = vmatprep.subr.mxu0 0.0
    %199 = vmatpush2.msra.mxu0 0.0
    %200 = vmatprep.subr.mxu0 0.0
    %201 = vmatpush2.msra.mxu0 0.0
    %202 = vmatprep.subr.mxu0 0.0
    %203 = vmatpush2.msra.mxu0 0.0
    %204 = vmatprep.subr.mxu0 0.0
    %205 = vmatpush2.msra.mxu0 0.0
    %206 = vmatprep.subr.mxu0 0.0
    %207 = vmatpush2.msra.mxu0 0.0
    %208 = vmatprep.subr.mxu0 0.0
    %209 = vmatpush2.msra.mxu0 0.0
    %210 = vmatprep.subr.mxu0 0.0
    %211 = vmatpush2.msra.mxu0 0.0
    %212 = vmatprep.subr.mxu0 0.0
    %213 = vmatpush2.msra.mxu0 0.0
    %214 = vmatprep.subr.mxu0 0.0
    %215 = vmatpush2.msra.mxu0 0.0
    %216 = vmatprep.subr.mxu0 0.0
    %217 = vmatpush2.msra.mxu0 0.0
    %218 = vmatprep.subr.mxu0 0.0
    %219 = vmatpush2.msra.mxu0 0.0
    %220 = vmatprep.subr.mxu0 0.0
    %221 = vmatpush2.msra.mxu0 0.0
    %222 = vmatprep.subr.mxu0 0.0
    %223 = vmatpush2.msra.mxu0 0.0
    %224 = vmatprep.subr.mxu0 0.0
    %225 = vmatpush2.msra.mxu0 0.0
    %226 = vmatprep.mubr.f32.mxu0 0.0
    %227 = vmatmul.mubr.f32.gmra.mxu0 %v154
    %v228 = vpop.f32.mrf.mxu0
    %v229 = vadd.f32 %v146, %v228
    %v230 = vpop.f32.mrf.mxu0
    %231 = vmatprep.mubr.f32.mxu0 0.0
    %232 = vmatmul.mubr.f32.gmra.mxu0 %v157
    %v233 = vpop.f32.mrf.mxu0
    %v234 = vadd.f32 %v151, %v233
    %v235 = vpop.f32.mrf.mxu0
    %236 = vdwg.mxu0
    %v237 = vmax.f32 %v229, 0.0
    %v238 = vmax.f32 %v234, 0.0
    %v239 = vld [vmem:[%s5] sm:$0xff]
    %v240 = vld [vmem:[%s5 + $0x8] sm:$0x3]
    %v241 = vld [vmem:[%s6] sm:$0xff]
    %v242 = vld [vmem:[%s6 + $0x8] sm:$0x3]
    %244 = vset.pattern.permute.xlu0 0
    %245 = vperm.xlu0 %244, %v241
    %v246 = vpop.permute.xlu0 %245
    %249 = vset.pattern.permute.xlu0 0
    %250 = vperm.xlu0 %249, %v242
    %v251 = vpop.permute.xlu0 %250
    %v254 = vsel %vm51, %v239, 0
    %v257 = vsel %vm51, %v240, 0
    %v260 = vsel %vm58, %v238, 0
    %262 = vmatprep.subr.mxu0 0.0
    %263 = vmatpush1.msra.mxu0 0.0
    %264 = vmatprep.subr.mxu0 0.0
    %265 = vmatpush1.msra.mxu0 0.0
    %266 = vmatprep.subr.mxu0 0.0
    %267 = vmatpush1.msra.mxu0 0.0
    %268 = vmatprep.subr.mxu0 0.0
    %269 = vmatpush1.msra.mxu0 0.0
    %270 = vmatprep.subr.mxu0 0.0
    %271 = vmatpush1.msra.mxu0 0.0
    %272 = vmatprep.subr.mxu0 0.0
    %273 = vmatpush1.msra.mxu0 0.0
    %274 = vmatprep.subr.mxu0 0.0
    %275 = vmatpush1.msra.mxu0 0.0
    %276 = vmatprep.subr.mxu0 0.0
    %277 = vmatpush1.msra.mxu0 0.0
    %278 = vmatprep.subr.mxu0 0.0
    %279 = vmatpush1.msra.mxu0 0.0
    %280 = vmatprep.subr.mxu0 0.0
    %281 = vmatpush1.msra.mxu0 0.0
    %282 = vmatprep.subr.mxu0 0.0
    %283 = vmatpush1.msra.mxu0 0.0
    %284 = vmatprep.subr.mxu0 0.0
    %285 = vmatpush1.msra.mxu0 0.0
    %286 = vmatprep.subr.mxu0 0.0
    %287 = vmatpush1.msra.mxu0 0.0
    %288 = vmatprep.subr.mxu0 0.0
    %289 = vmatpush1.msra.mxu0 0.0
    %290 = vmatprep.subr.mxu0 0.0
    %291 = vmatpush1.msra.mxu0 %v260
    %292 = vmatprep.subr.mxu0 0.0
    %293 = vmatpush1.msra.mxu0 %v237
    %294 = vmatprep.subr.mxu0 0.0
    %295 = vmatpush2.msra.mxu0 0.0
    %296 = vmatprep.subr.mxu0 0.0
    %297 = vmatpush2.msra.mxu0 0.0
    %298 = vmatprep.subr.mxu0 0.0
    %299 = vmatpush2.msra.mxu0 0.0
    %300 = vmatprep.subr.mxu0 0.0
    %301 = vmatpush2.msra.mxu0 0.0
    %302 = vmatprep.subr.mxu0 0.0
    %303 = vmatpush2.msra.mxu0 0.0
    %304 = vmatprep.subr.mxu0 0.0
    %305 = vmatpush2.msra.mxu0 0.0
    %306 = vmatprep.subr.mxu0 0.0
    %307 = vmatpush2.msra.mxu0 0.0
    %308 = vmatprep.subr.mxu0 0.0
    %309 = vmatpush2.msra.mxu0 0.0
    %310 = vmatprep.subr.mxu0 0.0
    %311 = vmatpush2.msra.mxu0 0.0
    %312 = vmatprep.subr.mxu0 0.0
    %313 = vmatpush2.msra.mxu0 0.0
    %314 = vmatprep.subr.mxu0 0.0
    %315 = vmatpush2.msra.mxu0 0.0
    %316 = vmatprep.subr.mxu0 0.0
    %317 = vmatpush2.msra.mxu0 0.0
    %318 = vmatprep.subr.mxu0 0.0
    %319 = vmatpush2.msra.mxu0 0.0
    %320 = vmatprep.subr.mxu0 0.0
    %321 = vmatpush2.msra.mxu0 0.0
    %322 = vmatprep.subr.mxu0 0.0
    %323 = vmatpush2.msra.mxu0 0.0
    %324 = vmatprep.subr.mxu0 0.0
    %325 = vmatpush2.msra.mxu0 0.0
    %326 = vmatprep.mubr.f32.mxu0 0.0
    %327 = vmatmul.mubr.f32.gmra.mxu0 %v254
    %v328 = vpop.f32.mrf.mxu0
    %v329 = vadd.f32 %v246, %v328
    %v330 = vpop.f32.mrf.mxu0
    %331 = vmatprep.mubr.f32.mxu0 0.0
    %332 = vmatmul.mubr.f32.gmra.mxu0 %v257
    %v333 = vpop.f32.mrf.mxu0
    %v334 = vadd.f32 %v251, %v333
    %v335 = vpop.f32.mrf.mxu0
    %336 = vdwg.mxu0
    %v337 = vmax.f32 %v329, 0.0
    %v338 = vmax.f32 %v334, 0.0
    %v339 = vld [vmem:[%s7] sm:$0x3]
    %v340 = vld [vmem:[%s8] sm:$0x3]
    %342 = vset.pattern.permute.xlu0 0
    %343 = vperm.xlu0 %342, %v340
    %v344 = vpop.permute.xlu0 %343
    %v347 = vsel %vm51, %v339, 0
    %v350 = vsel %vm58, %v338, 0
    %352 = vmatprep.subr.mxu0 0.0
    %353 = vmatpush1.msra.mxu0 0.0
    %354 = vmatprep.subr.mxu0 0.0
    %355 = vmatpush1.msra.mxu0 0.0
    %356 = vmatprep.subr.mxu0 0.0
    %357 = vmatpush1.msra.mxu0 0.0
    %358 = vmatprep.subr.mxu0 0.0
    %359 = vmatpush1.msra.mxu0 0.0
    %360 = vmatprep.subr.mxu0 0.0
    %361 = vmatpush1.msra.mxu0 0.0
    %362 = vmatprep.subr.mxu0 0.0
    %363 = vmatpush1.msra.mxu0 0.0
    %364 = vmatprep.subr.mxu0 0.0
    %365 = vmatpush1.msra.mxu0 0.0
    %366 = vmatprep.subr.mxu0 0.0
    %367 = vmatpush1.msra.mxu0 0.0
    %368 = vmatprep.subr.mxu0 0.0
    %369 = vmatpush1.msra.mxu0 0.0
    %370 = vmatprep.subr.mxu0 0.0
    %371 = vmatpush1.msra.mxu0 0.0
    %372 = vmatprep.subr.mxu0 0.0
    %373 = vmatpush1.msra.mxu0 0.0
    %374 = vmatprep.subr.mxu0 0.0
    %375 = vmatpush1.msra.mxu0 0.0
    %376 = vmatprep.subr.mxu0 0.0
    %377 = vmatpush1.msra.mxu0 0.0
    %378 = vmatprep.subr.mxu0 0.0
    %379 = vmatpush1.msra.mxu0 0.0
    %380 = vmatprep.subr.mxu0 0.0
    %381 = vmatpush1.msra.mxu0 %v350
    %382 = vmatprep.subr.mxu0 0.0
    %383 = vmatpush1.msra.mxu0 %v337
    %384 = vmatprep.subr.mxu0 0.0
    %385 = vmatpush2.msra.mxu0 0.0
    %386 = vmatprep.subr.mxu0 0.0
    %387 = vmatpush2.msra.mxu0 0.0
    %388 = vmatprep.subr.mxu0 0.0
    %389 = vmatpush2.msra.mxu0 0.0
    %390 = vmatprep.subr.mxu0 0.0
    %391 = vmatpush2.msra.mxu0 0.0
    %392 = vmatprep.subr.mxu0 0.0
    %393 = vmatpush2.msra.mxu0 0.0
    %394 = vmatprep.subr.mxu0 0.0
    %395 = vmatpush2.msra.mxu0 0.0
    %396 = vmatprep.subr.mxu0 0.0
    %397 = vmatpush2.msra.mxu0 0.0
    %398 = vmatprep.subr.mxu0 0.0
    %399 = vmatpush2.msra.mxu0 0.0
    %400 = vmatprep.subr.mxu0 0.0
    %401 = vmatpush2.msra.mxu0 0.0
    %402 = vmatprep.subr.mxu0 0.0
    %403 = vmatpush2.msra.mxu0 0.0
    %404 = vmatprep.subr.mxu0 0.0
    %405 = vmatpush2.msra.mxu0 0.0
    %406 = vmatprep.subr.mxu0 0.0
    %407 = vmatpush2.msra.mxu0 0.0
    %408 = vmatprep.subr.mxu0 0.0
    %409 = vmatpush2.msra.mxu0 0.0
    %410 = vmatprep.subr.mxu0 0.0
    %411 = vmatpush2.msra.mxu0 0.0
    %412 = vmatprep.subr.mxu0 0.0
    %413 = vmatpush2.msra.mxu0 0.0
    %414 = vmatprep.subr.mxu0 0.0
    %415 = vmatpush2.msra.mxu0 0.0
    %416 = vmatprep.mubr.f32.mxu0 0.0
    %417 = vmatmul.mubr.f32.gmra.mxu0 %v347
    %v418 = vpop.f32.mrf.mxu0
    %v419 = vadd.f32 %v344, %v418
    %v420 = vpop.f32.mrf.mxu0
    %421 = vdwg.mxu0
    %vm422 = vcmask 58368
    %423 = vst.msk [vmem:[#allocation2] sm:$0x3] %vm422, %v419
    // Predicated region
    $region38: #{tpu_custom_call.1} parent=1 // pred_check
      _
    $region39: #{tpu_custom_call.1} parent=1 // pred_check_branch
      %425 = sbr.rel (0) target = $region41
    $region40: #{tpu_custom_call.1} parent=1 // pred_region
      %s427 = ssub.s32 32, 32
      %428 = vsyncadd [#allocation3], %s427
      %s430 = sshll.u32 [#allocation2], 4
      %s431 = int_to_ptr.vmem [resolvable:$true] %s430
      %433 = dma.vmem_to_hbm [thread:$0]  %s431, 32, %s9, [#allocation3]
    $region41: #{tpu_custom_call.1} parent=1 // pred_fallthru
      _
    // Predicated region
    $region42: #{tpu_custom_call.1} parent=1 // pred_check
      _
    $region43: #{tpu_custom_call.1} parent=1 // pred_check_branch
      %435 = sbr.rel (0) target = $region45
    $region44: #{tpu_custom_call.1} parent=1 // pred_region
      %436 = dma.done [#allocation3], 32
    $region45: #{tpu_custom_call.1} parent=1 // pred_fallthru
      _
    %437 = vsyncpa [#allocation3], 1

</llo_original>
